<compile_context>
chip_gen: v5e
topology: v5e:2x2
jax: 0.10.0
libtpu: 0.0.40
codegen_flags: <defaults>
</compile_context>

<pallas_src>
import jax
import jax.numpy as jnp
from jax.experimental import pallas as pl
from jax.experimental.pallas import tpu as pltpu


def _round_up(x, m):
    return ((x + m - 1) // m) * m


def _fit_tile(requested, padded_dim, unit):
    """Largest multiple of `unit` that divides `padded_dim` and is <= requested."""
    n = padded_dim // unit
    best = 1
    for d in range(1, n + 1):
        if n % d == 0 and d * unit <= requested:
            best = d
    return best * unit


def _stable_sigmoid(z):
    # Exact, numerically stable sigmoid: exp(-|z|) <= 1 (no overflow), exact divide
    # (no approx reciprocal -> matches torch.sigmoid to f32 rounding).
    ez = jnp.exp(-jnp.abs(z))
    return jnp.where(z >= 0, 1.0 / (1.0 + ez), ez / (1.0 + ez))


def _olp_kernel_inplace(x_ref, w_ref, b_ref, o_ref):
    """f32-output variant: accumulate directly into the resident output tile."""
    k = pl.program_id(2)

    @pl.when(k == 0)
    def _():
        o_ref[...] = jnp.zeros_like(o_ref)

    o_ref[...] += jnp.dot(x_ref[...], w_ref[...],
                          preferred_element_type=jnp.float32)

    @pl.when(k == pl.num_programs(2) - 1)
    def _():
        o_ref[...] = _stable_sigmoid(o_ref[...] + b_ref[...]).astype(o_ref.dtype)


def _olp_kernel_acc(x_ref, w_ref, b_ref, o_ref, acc_ref):
    """Generic-output variant: f32 scratch accumulator, cast in the epilogue."""
    k = pl.program_id(2)

    @pl.when(k == 0)
    def _():
        acc_ref[...] = jnp.zeros_like(acc_ref)

    acc_ref[...] += jnp.dot(x_ref[...], w_ref[...],
                            preferred_element_type=jnp.float32)

    @pl.when(k == pl.num_programs(2) - 1)
    def _():
        o_ref[...] = _stable_sigmoid(acc_ref[...] + b_ref[...]).astype(o_ref.dtype)


def prepare_olp_params(w, b, *, compute_dtype=jnp.bfloat16):
    """One-time prep of the static Linear params.

    Casts W to the MXU compute dtype (bf16 by default) and zero-pads W / b to
    128-multiples so olp_forward never has to touch the full weight per call.
    Returns (w_padded [Dinp, Doutp], b_padded f32 [1, Doutp]).
    """
    Din, Dout = w.shape
    Dinp = _round_up(Din, 128)
    Doutp = _round_up(Dout, 128)
    w = w.astype(compute_dtype)
    if (Dinp, Doutp) != (Din, Dout):
        w = jnp.pad(w, ((0, Dinp - Din), (0, Doutp - Dout)))
    b = b.reshape(1, Dout).astype(jnp.float32)
    if Doutp != Dout:
        b = jnp.pad(b, ((0, 0), (0, Doutp - Dout)))
    return w, b


def olp_forward(x, w, b, *, out_features=None, tm=512, tn=1024, tk=1024,
                out_dtype=None):
    """y = sigmoid(x @ w + b).

    x: [B, Din]          any float dtype; cast to w.dtype (bf16 by default).
    w: [Dinp, Doutp]     pre-padded/cast via prepare_olp_params (128-aligned).
    b: [1, Doutp]        f32 bias, padded to match w.
    out_features:        logical output width (<= Doutp); default = Doutp.
    out_dtype:           output dtype; default = x.dtype (accumulation is f32).
    """
    B, Din = x.shape
    b = b.reshape(1, -1).astype(jnp.float32)
    Dinp, Doutp = w.shape
    out_dtype = jnp.dtype(out_dtype if out_dtype is not None else x.dtype)

    # Robustness fallback: align unprepared params (prefer prepare_olp_params
    # so this pad happens once at init, not per forward call).
    Dinp_a, Doutp_a = _round_up(Dinp, 128), _round_up(Doutp, 128)
    if (Dinp_a, Doutp_a) != (Dinp, Doutp):
        w = jnp.pad(w, ((0, Dinp_a - Dinp), (0, Doutp_a - Doutp)))
        b = jnp.pad(b, ((0, 0), (0, Doutp_a - Doutp)))
        Dinp, Doutp = Dinp_a, Doutp_a
    assert Din <= Dinp, "x inner dim larger than (padded) weight inner dim"

    Dout = out_features if out_features is not None else Doutp
    assert Dout <= Doutp

    # MXU operands in the weight's compute dtype (bf16 default).
    if x.dtype != w.dtype:
        x = x.astype(w.dtype)
    in_itemsize = jnp.dtype(w.dtype).itemsize
    out_itemsize = out_dtype.itemsize

    # bf16 packs 16 rows per sublane group; round the batch tile accordingly.
    sub = 16 if jnp.dtype(w.dtype) == jnp.dtype(jnp.bfloat16) else 8
    Bp = _round_up(B, sub)
    tm = _fit_tile(tm, Bp, sub)
    tk = _fit_tile(tk, Dinp, 128)
    tn = _fit_tile(tn, Doutp, 128)

    # Keep >= 2 parallel blocks when possible so v7x's two TensorCores both
    # get work (a (1, 1, K) grid would idle one core).
    if Bp // tm == 1 and Doutp // tn == 1 and Doutp >= 256 and (Doutp // 2) % 128 == 0:
        tn = Doutp // 2

    # Only x (small, dynamic) is padded per call.
    if (Bp, Dinp) != (B, Din):
        x = jnp.pad(x, ((0, Bp - B), (0, Dinp - Din)))

    grid = (Bp // tm, Doutp // tn, Dinp // tk)

    # f32 output -> accumulate straight into the resident output tile
    # (no separate acc scratch: saves tm*tn*4 B of VMEM + one VMEM read).
    use_scratch_acc = out_dtype != jnp.dtype(jnp.float32)
    kernel = _olp_kernel_acc if use_scratch_acc else _olp_kernel_inplace
    scratch_shapes = ([pltpu.VMEM((tm, tn), jnp.float32)]
                      if use_scratch_acc else [])

    # Raise the scoped-VMEM limit only when the chosen tiles actually need it.
    vmem_need = (2 * tm * tk * in_itemsize          # double-buffered x tiles
                 + 2 * tk * tn * in_itemsize        # double-buffered w tiles
                 + 2 * tm * tn * out_itemsize       # double-buffered out tiles
                 + 2 * tn * 4                       # bias tiles
                 + (tm * tn * 4 if use_scratch_acc else 0))
    compiler_kwargs = dict(
        dimension_semantics=("parallel", "parallel", "arbitrary"))
    if vmem_need > 32 * 1024 * 1024:
        compiler_kwargs["vmem_limit_bytes"] = int(vmem_need * 1.25)

    cost = pl.CostEstimate(
        flops=2 * Bp * Dinp * Doutp,
        transcendentals=Bp * Doutp,
        bytes_accessed=(Bp * Dinp * in_itemsize + Dinp * Doutp * in_itemsize
                        + Doutp * 4 + Bp * Doutp * out_itemsize),
    )

    out = pl.pallas_call(
        kernel,
        out_shape=jax.ShapeDtypeStruct((Bp, Doutp), out_dtype),
        grid_spec=pltpu.PrefetchScalarGridSpec(
            num_scalar_prefetch=0,
            grid=grid,
            in_specs=[
                pl.BlockSpec((tm, tk), lambda i, j, k: (i, k)),
                pl.BlockSpec((tk, tn), lambda i, j, k: (k, j)),
                pl.BlockSpec((1, tn), lambda i, j, k: (0, j)),
            ],
            out_specs=pl.BlockSpec((tm, tn), lambda i, j, k: (i, j)),
            scratch_shapes=scratch_shapes,
        ),
        compiler_params=pltpu.CompilerParams(**compiler_kwargs),
        cost_estimate=cost,
    )(x, w, b)

    if (Bp, Doutp) != (B, Dout):
        out = out[:B, :Dout]
    return out


def init_olp_params(key, input_neurons, output_neurons, dtype=jnp.float32):
    """Deterministic init matching nn.Linear's U(-1/sqrt(in), 1/sqrt(in))."""
    kw, kb = jax.random.split(key)
    bound = 1.0 / (input_neurons ** 0.5)
    # PyTorch stores weight as [out, in]; we keep the transposed [in, out]
    # layout so the kernel does x @ W directly.
    w = jax.random.uniform(
        kw, (input_neurons, output_neurons), dtype, minval=-bound, maxval=bound)
    b = jax.random.uniform(
        kb, (1, output_neurons), dtype, minval=-bound, maxval=bound)
    return w, b


if __name__ == "__main__":
    key = jax.random.PRNGKey(0)
    k_x, k_p = jax.random.split(key)

    batch = 8
    input_neurons = 32
    output_neurons = 16

    x = jax.random.normal(k_x, (batch, input_neurons), jnp.float32)
    w, b = init_olp_params(k_p, input_neurons, output_neurons)

    # One-time static-param prep: bf16 cast + 128-alignment padding.
    wp, bp = prepare_olp_params(w, b, compute_dtype=jnp.bfloat16)

    # Plain-JAX reference of the PyTorch forward (f32).
    ref = jax.nn.sigmoid(x @ w + b)

    # Default path: bf16 MXU operands, f32 accumulation, exact f32 sigmoid,
    # f32 output (in-place accumulation kernel, no scratch accumulator).
    out = olp_forward(x, wp, bp, out_features=output_neurons)
    out = jax.block_until_ready(out)
    assert out.shape == (batch, output_neurons)
    assert out.dtype == jnp.float32
    # Tolerance covers bf16 rounding of x/W (accumulation + epilogue are f32).
    assert jnp.allclose(out, ref, atol=2e-2, rtol=2e-2), float(
        jnp.max(jnp.abs(out - ref)))

    # bf16-output path (halves output writeback / VMEM out tiles; uses the
    # f32 scratch-accumulator kernel variant).
    out_bf16 = olp_forward(x, wp, bp, out_features=output_neurons,
                           out_dtype=jnp.bfloat16)
    out_bf16 = jax.block_until_ready(out_bf16)
    assert out_bf16.dtype == jnp.bfloat16
    assert jnp.allclose(out_bf16.astype(jnp.float32), ref,
                        atol=2e-2, rtol=2e-2), float(
        jnp.max(jnp.abs(out_bf16.astype(jnp.float32) - ref)))

    print("KERNEL_OK")
</pallas_src>

<mosaic_0001>
module attributes {stable_mosaic.version = 11 : i64} {
  func.func @_olp_kernel_inplace(%arg0: i32, %arg1: i32, %arg2: i32, %arg3: memref<16x128xbf16, #tpu.memory_space<vmem>>, %arg4: memref<128x128xbf16, #tpu.memory_space<vmem>>, %arg5: memref<1x128xf32, #tpu.memory_space<vmem>>, %arg6: memref<16x128xf32, #tpu.memory_space<vmem>>) attributes {dimension_semantics = [#tpu.dimension_semantics<parallel>, #tpu.dimension_semantics<parallel>, #tpu.dimension_semantics<arbitrary>], iteration_bounds = array<i64: 1, 1, 1>, scalar_prefetch = 0 : i64, scratch_operands = 0 : i64, tpu.core_type = #tpu.core_type<tc>, window_params = [{transform_indices = @transform_0, window_bounds = array<i64: 16, 128>}, {transform_indices = @transform_1, window_bounds = array<i64: 128, 128>}, {transform_indices = @transform_2, window_bounds = array<i64: 1, 128>}, {transform_indices = @transform_3, window_bounds = array<i64: 16, 128>}]} {
    %c0_i32 = arith.constant 0 : i32
    %0 = arith.cmpi eq, %arg2, %c0_i32 : i32
    %1 = arith.extui %0 : i1 to i32
    %c0_i32_0 = arith.constant 0 : i32
    %2 = arith.cmpi ne, %1, %c0_i32_0 : i32
    scf.if %2 {
      %cst_10 = arith.constant 0.000000e+00 : f32
      %12 = vector.broadcast %cst_10 : f32 to vector<16x128xf32>
      %c0_11 = arith.constant 0 : index
      %c0_12 = arith.constant 0 : index
      %13 = vector.load %arg6[%c0_11, %c0_12] : memref<16x128xf32, #tpu.memory_space<vmem>>, vector<16x128xf32>
      tpu.vector_store %arg6[%c0_11, %c0_12], %12 {strides = array<i32>} : memref<16x128xf32, #tpu.memory_space<vmem>>, vector<16x128xf32>,
    } else {
    }
    %c0 = arith.constant 0 : index
    %c0_1 = arith.constant 0 : index
    %3 = vector.load %arg6[%c0, %c0_1] : memref<16x128xf32, #tpu.memory_space<vmem>>, vector<16x128xf32>
    %c0_2 = arith.constant 0 : index
    %c0_3 = arith.constant 0 : index
    %4 = vector.load %arg3[%c0_2, %c0_3] : memref<16x128xbf16, #tpu.memory_space<vmem>>, vector<16x128xbf16>
    %c0_4 = arith.constant 0 : index
    %c0_5 = arith.constant 0 : index
    %5 = vector.load %arg4[%c0_4, %c0_5] : memref<128x128xbf16, #tpu.memory_space<vmem>>, vector<128x128xbf16>
    %cst = arith.constant dense<0.000000e+00> : vector<16x128xf32>
    %6 = tpu.matmul %4, %5, %cst {dimension_numbers = #tpu.dot_dimension_numbers<[1], [0], [0], [1], [0, 0, 1, 1], [], []>} : vector<16x128xbf16>, vector<128x128xbf16>, vector<16x128xf32> -> vector<16x128xf32>
    %7 = arith.addf %3, %6 : vector<16x128xf32>
    %c0_6 = arith.constant 0 : index
    %c0_7 = arith.constant 0 : index
    %8 = vector.load %arg6[%c0_6, %c0_7] : memref<16x128xf32, #tpu.memory_space<vmem>>, vector<16x128xf32>
    tpu.vector_store %arg6[%c0_6, %c0_7], %7 {strides = array<i32>} : memref<16x128xf32, #tpu.memory_space<vmem>>, vector<16x128xf32>,
    %c0_i32_8 = arith.constant 0 : i32
    %9 = arith.cmpi eq, %arg2, %c0_i32_8 : i32
    %10 = arith.extui %9 : i1 to i32
    %c0_i32_9 = arith.constant 0 : i32
    %11 = arith.cmpi ne, %10, %c0_i32_9 : i32
    scf.if %11 {
      %c0_10 = arith.constant 0 : index
      %c0_11 = arith.constant 0 : index
      %12 = vector.load %arg6[%c0_10, %c0_11] : memref<16x128xf32, #tpu.memory_space<vmem>>, vector<16x128xf32>
      %c0_12 = arith.constant 0 : index
      %c0_13 = arith.constant 0 : index
      %13 = vector.load %arg5[%c0_12, %c0_13] : memref<1x128xf32, #tpu.memory_space<vmem>>, vector<1x128xf32>
      %14 = vector.broadcast %13 : vector<1x128xf32> to vector<16x128xf32>
      %15 = arith.addf %12, %14 : vector<16x128xf32>
      %16 = math.absf %15 : vector<16x128xf32>
      %cst_14 = arith.constant 0.000000e+00 : f32
      %17 = vector.broadcast %cst_14 : f32 to vector<16x128xf32>
      %18 = arith.subf %17, %16 : vector<16x128xf32>
      %19 = math.exp %18 : vector<16x128xf32>
      %cst_15 = arith.constant 0.000000e+00 : f32
      %20 = vector.broadcast %cst_15 : f32 to vector<16x128xf32>
      %21 = arith.cmpf oge, %15, %20 : vector<16x128xf32>
      %cst_16 = arith.constant 1.000000e+00 : f32
      %22 = vector.broadcast %cst_16 : f32 to vector<16x128xf32>
      %23 = arith.addf %22, %19 : vector<16x128xf32>
      %cst_17 = arith.constant 1.000000e+00 : f32
      %24 = vector.broadcast %cst_17 : f32 to vector<16x128xf32>
      %25 = arith.divf %24, %23 : vector<16x128xf32>
      %cst_18 = arith.constant 1.000000e+00 : f32
      %26 = vector.broadcast %cst_18 : f32 to vector<16x128xf32>
      %27 = arith.addf %26, %19 : vector<16x128xf32>
      %28 = arith.divf %19, %27 : vector<16x128xf32>
      %29 = arith.select %21, %25, %28 : vector<16x128xi1>, vector<16x128xf32>
      %c0_19 = arith.constant 0 : index
      %c0_20 = arith.constant 0 : index
      %30 = vector.load %arg6[%c0_19, %c0_20] : memref<16x128xf32, #tpu.memory_space<vmem>>, vector<16x128xf32>
      tpu.vector_store %arg6[%c0_19, %c0_20], %29 {strides = array<i32>} : memref<16x128xf32, #tpu.memory_space<vmem>>, vector<16x128xf32>,
    } else {
    }
    return
  }
  func.func @transform_0(%arg0: i32, %arg1: i32, %arg2: i32) -> (i32, i32) {
    %c0_i32 = arith.constant 0 : i32
    return %arg0, %arg2 : i32, i32
  }
  func.func @transform_1(%arg0: i32, %arg1: i32, %arg2: i32) -> (i32, i32) {
    %c0_i32 = arith.constant 0 : i32
    return %arg2, %arg1 : i32, i32
  }
  func.func @transform_2(%arg0: i32, %arg1: i32, %arg2: i32) -> (i32, i32) {
    %c0_i32 = arith.constant 0 : i32
    %c0_i32_0 = arith.constant 0 : i32
    return %c0_i32, %arg1 : i32, i32
  }
  func.func @transform_3(%arg0: i32, %arg1: i32, %arg2: i32) -> (i32, i32) {
    %c0_i32 = arith.constant 0 : i32
    return %arg0, %arg1 : i32, i32
  }
}

</mosaic_0001>

<llo_original>
// kernel: tpu_custom_call.1
$region0: #{tpu_custom_call.1}
  #allocation0 [shape = 'u32[]', space=smem, size = 0x4, offset = 0x4, fixed_abs, tag = 'smem constant byte address 0x4 - core index']
  #allocation1 [shape = 'u32[72,128]{1,0:T(1,128)}', space=vmem, size = 0x9000, scoped, tag = 'internal scratch']
  %s0 = inlined_call_operand.hbm [shape: bf16[16,128], index: 0, kind: input, shape index: {}]
  %s1 = inlined_call_operand.hbm [shape: bf16[128,128], index: 1, kind: input, shape index: {}]
  %s2 = inlined_call_operand.vmem [shape: f32[1,128], index: 2, kind: input, shape index: {}]
  %s3 = inlined_call_operand.hbm [shape: f32[16,128], index: 3, kind: output, shape index: {}]
  %s4 = sld [smem:[#allocation0]]
  $region38: #{tpu_custom_call.1} parent=0
    _
  %s6 = ssub.s32 1, %s4
  %s7 = scalar_select 0, %s6, %s4
  $region1: #{tpu_custom_call.1} parent=0
    #allocation2 [shape = 'u8[4096]{0}', space=vmem, size = 0x1000, scoped, tag = 'input window, operand 0, single buffered']
    #allocation3 [shape = 's32[1]{0}', space=sflag, size = 0x4, scoped, tag = 'scoped memory for tpu_custom_call.1']
    #allocation4 [shape = 's32[1]{0}', space=sflag, size = 0x4, scoped, tag = 'scoped memory for tpu_custom_call.1']
    #allocation5 [shape = 'u8[32768]{0}', space=vmem, size = 0x8000, scoped, tag = 'input window, operand 1, single buffered']
    #allocation6 [shape = 's32[1]{0}', space=sflag, size = 0x4, scoped, tag = 'scoped memory for tpu_custom_call.1']
    #allocation7 [shape = 'u8[8192]{0}', space=vmem, size = 0x2000, scoped, tag = 'output window, operand 0, single buffered']
    %8 = vsyncpa [#allocation3], 0
    %9 = vsyncpa [#allocation6], 0
    %10 = vsyncpa [#allocation4], 0
    // Predicated region
    $region2: #{tpu_custom_call.1} parent=1 // pred_check
      _
    $region3: #{tpu_custom_call.1} parent=1 // pred_check_branch
      %12 = sbr.rel (0) target = $region5
    $region4: #{tpu_custom_call.1} parent=1 // pred_region
      %14 = vsyncadd [#allocation3], 0
      %s15 = sshll.u32 %s0, 4
      %s16 = int_to_ptr.hbm [resolvable:$true] %s15
      %s17 = sshll.u32 [#allocation2], 4
      %s18 = int_to_ptr.vmem [resolvable:$true] %s17
      %23 = dma.hbm_to_vmem [thread:$0]  %s16, 128, %s18, [#allocation3], 64, 64, 4
    $region5: #{tpu_custom_call.1} parent=1 // pred_fallthru
      _
    // Predicated region
    $region6: #{tpu_custom_call.1} parent=1 // pred_check
      _
    $region7: #{tpu_custom_call.1} parent=1 // pred_check_branch
      %25 = sbr.rel (0) target = $region9
    $region8: #{tpu_custom_call.1} parent=1 // pred_region
      %27 = vsyncadd [#allocation6], 0
      %s28 = sshll.u32 %s1, 4
      %s29 = int_to_ptr.hbm [resolvable:$true] %s28
      %s30 = sshll.u32 [#allocation5], 4
      %s31 = int_to_ptr.vmem [resolvable:$true] %s30
      %36 = dma.hbm_to_vmem [thread:$0]  %s29, 1024, %s31, [#allocation6], 64, 64, 4
    $region9: #{tpu_custom_call.1} parent=1 // pred_fallthru
      _
    // Predicated region
    $region10: #{tpu_custom_call.1} parent=1 // pred_check
      _
    $region11: #{tpu_custom_call.1} parent=1 // pred_check_branch
      %38 = sbr.rel (0) target = $region13
    $region12: #{tpu_custom_call.1} parent=1 // pred_region
      _
    $region13: #{tpu_custom_call.1} parent=1 // pred_fallthru
      _
    // Predicated region
    $region14: #{tpu_custom_call.1} parent=1 // pred_check
      _
    $region15: #{tpu_custom_call.1} parent=1 // pred_check_branch
      %40 = sbr.rel (0) target = $region17
    $region16: #{tpu_custom_call.1} parent=1 // pred_region
      %42 = dma.done [#allocation3], 128
    $region17: #{tpu_custom_call.1} parent=1 // pred_fallthru
      _
    // Predicated region
    $region18: #{tpu_custom_call.1} parent=1 // pred_check
      _
    $region19: #{tpu_custom_call.1} parent=1 // pred_check_branch
      %44 = sbr.rel (0) target = $region21
    $region20: #{tpu_custom_call.1} parent=1 // pred_region
      %46 = dma.done [#allocation6], 1024
    $region21: #{tpu_custom_call.1} parent=1 // pred_fallthru
      _
    %p47 = scmp.eq.s32.totalorder 0, 0
    // Predicated region
    $region22: #{tpu_custom_call.1} parent=1 // pred_check
      %p48 = pneg %p47
    $region23: #{tpu_custom_call.1} parent=1 // pred_check_branch
      %50 = sbr.rel (%p48) target = $region25
    $region24: #{tpu_custom_call.1} parent=1 // pred_region
      %51 = vst [vmem:[#allocation7] sm:$0xff] 0.0
      %52 = vst [vmem:[#allocation7 + $0x8] sm:$0xff] 0.0
    $region25: #{tpu_custom_call.1} parent=1 // pred_fallthru
      _
    %v53 = vld [vmem:[#allocation7] sm:$0xff]
    %v54 = vld [vmem:[#allocation7 + $0x8] sm:$0xff]
    %v55 = vld [vmem:[#allocation2] sm:$0xf]
    %v56 = vld [vmem:[#allocation2 + $0x4] sm:$0xf]
    %v57 = vld [vmem:[#allocation5] sm:$0xf]
    %v58 = vld [vmem:[#allocation5 + $0x4] sm:$0xf]
    %v59 = vld [vmem:[#allocation5 + $0x8] sm:$0xf]
    %v60 = vld [vmem:[#allocation5 + $0xc] sm:$0xf]
    %v61 = vld [vmem:[#allocation5 + $0x10] sm:$0xf]
    %v62 = vld [vmem:[#allocation5 + $0x14] sm:$0xf]
    %v63 = vld [vmem:[#allocation5 + $0x18] sm:$0xf]
    %v64 = vld [vmem:[#allocation5 + $0x1c] sm:$0xf]
    %v65 = vld [vmem:[#allocation5 + $0x20] sm:$0xf]
    %v66 = vld [vmem:[#allocation5 + $0x24] sm:$0xf]
    %v67 = vld [vmem:[#allocation5 + $0x28] sm:$0xf]
    %v68 = vld [vmem:[#allocation5 + $0x2c] sm:$0xf]
    %v69 = vld [vmem:[#allocation5 + $0x30] sm:$0xf]
    %v70 = vld [vmem:[#allocation5 + $0x34] sm:$0xf]
    %v71 = vld [vmem:[#allocation5 + $0x38] sm:$0xf]
    %v72 = vld [vmem:[#allocation5 + $0x3c] sm:$0xf]
    %v75 = vunpack.c.l.b16 %v55
    %v76 = vunpack.c.l.b16 %v56
    %v77 = vpack.c.b16 %v76, %v75
    %v95 = vunpack.c.l.b16 %v57
    %v96 = vunpack.c.l.b16 %v58
    %v97 = vunpack.c.l.b16 %v59
    %v98 = vunpack.c.l.b16 %v60
    %v99 = vunpack.c.l.b16 %v61
    %v100 = vunpack.c.l.b16 %v62
    %v101 = vunpack.c.l.b16 %v63
    %v102 = vunpack.c.l.b16 %v64
    %v103 = vunpack.c.l.b16 %v65
    %v104 = vunpack.c.l.b16 %v66
    %v105 = vunpack.c.l.b16 %v67
    %v106 = vunpack.c.l.b16 %v68
    %v107 = vunpack.c.l.b16 %v69
    %v108 = vunpack.c.l.b16 %v70
    %v109 = vunpack.c.l.b16 %v71
    %v110 = vunpack.c.l.b16 %v72
    %v111 = vpack.c.b16 %v96, %v95
    %v112 = vpack.c.b16 %v98, %v97
    %v113 = vpack.c.b16 %v100, %v99
    %v114 = vpack.c.b16 %v102, %v101
    %v115 = vpack.c.b16 %v104, %v103
    %v116 = vpack.c.b16 %v106, %v105
    %v117 = vpack.c.b16 %v108, %v107
    %v118 = vpack.c.b16 %v110, %v109
    %127 = vmatpush.bf16.msra.mxu0 %v118
    %128 = vmatpush.bf16.msra.mxu0 %v117
    %129 = vmatpush.bf16.msra.mxu0 %v116
    %130 = vmatpush.bf16.msra.mxu0 %v115
    %131 = vmatpush.bf16.msra.mxu0 %v114
    %132 = vmatpush.bf16.msra.mxu0 %v113
    %133 = vmatpush.bf16.msra.mxu0 %v112
    %134 = vmatpush.bf16.msra.mxu0 %v111
    %135 = vmatmul.bf16.gmra.mxu0 %v77
    %v136 = vpop.f32.mrf.mxu0
    %v137 = vadd.f32 0.0, %v136
    %v138 = vpop.f32.mrf.mxu0
    %v139 = vadd.f32 0.0, %v138
    %140 = vdwg.mxu0
    %v141 = vadd.f32 %v53, %v137
    %v142 = vadd.f32 %v54, %v139
    %143 = vst [vmem:[#allocation7] sm:$0xff] %v141
    %144 = vst [vmem:[#allocation7 + $0x8] sm:$0xff] %v142
    // Predicated region
    $region26: #{tpu_custom_call.1} parent=1 // pred_check
      %p145 = pneg %p47
    $region27: #{tpu_custom_call.1} parent=1 // pred_check_branch
      %147 = sbr.rel (%p145) target = $region29
    $region28: #{tpu_custom_call.1} parent=1 // pred_region
      %v148 = vld [vmem:[#allocation7] sm:$0xff]
      %v149 = vld [vmem:[#allocation7 + $0x8] sm:$0xff]
      %v150 = vld [vmem:[%s2] sm:$0x1]
      %v152 = vperm.slane %v150, 0
      %v154 = vadd.f32 %v148, %v152
      %v155 = vadd.f32 %v149, %v152
      %v156 = vand.u32 2147483647, %v154
      %v157 = vand.u32 2147483647, %v155
      %v158 = vsub.f32 0.0, %v156
      %v159 = vsub.f32 0.0, %v157
      %v160 = vmul.f32 %v158, 1.442695
      %v161 = vpow.pop %v160
      %v162 = vmul.f32 %v159, 1.442695
      %v163 = vpow.pop %v162
      %vm164 = vcmp.ge.f32.partialorder %v154, 0.0
      %vm165 = vcmp.ge.f32.partialorder %v155, 0.0
      %v166 = vadd.f32 %v161, 1.0
      %v167 = vadd.f32 %v163, 1.0
      %v168 = vrcp.pop %v166
      %v169 = vmul.f32 %v166, %v168
      %v170 = vsub.f32 1.0, %v169
      %v171 = vmul.f32 %v168, %v170
      %v172 = vadd.f32 %v168, %v171
      %vm173 = vweird.f32 %v166
      %vm174 = vweird.f32 %v168
      %vm175 = vmor %vm173, %vm174
      %v176 = vsel %vm175, %v168, %v172
      %v177 = vand.u32 2147483647, %v166
      %vm178 = vcmp.eq.f32.partialorder %v177, 8.507059e+37
      %v179 = vand.u32 %v166, 2147483648
      %v180 = vor.u32 1.1754944e-38, %v179
      %v181 = vsel %vm178, %v180, %v176
      %v182 = vmul.f32 1.0, %v181
      %v183 = vrcp.pop %v167
      %v184 = vmul.f32 %v167, %v183
      %v185 = vsub.f32 1.0, %v184
      %v186 = vmul.f32 %v183, %v185
      %v187 = vadd.f32 %v183, %v186
      %vm188 = vweird.f32 %v167
      %vm189 = vweird.f32 %v183
      %vm190 = vmor %vm188, %vm189
      %v191 = vsel %vm190, %v183, %v187
      %v192 = vand.u32 2147483647, %v167
      %vm193 = vcmp.eq.f32.partialorder %v192, 8.507059e+37
      %v194 = vand.u32 %v167, 2147483648
      %v195 = vor.u32 1.1754944e-38, %v194
      %v196 = vsel %vm193, %v195, %v191
      %v197 = vmul.f32 1.0, %v196
      %v198 = vmul.f32 %v161, %v181
      %v199 = vmul.f32 %v163, %v196
      %v200 = vsel %vm164, %v182, %v198
      %v201 = vsel %vm165, %v197, %v199
      %202 = vst [vmem:[#allocation7] sm:$0xff] %v200
      %203 = vst [vmem:[#allocation7 + $0x8] sm:$0xff] %v201
    $region29: #{tpu_custom_call.1} parent=1 // pred_fallthru
      _
    // Predicated region
    $region30: #{tpu_custom_call.1} parent=1 // pred_check
      _
    $region31: #{tpu_custom_call.1} parent=1 // pred_check_branch
      %205 = sbr.rel (0) target = $region33
    $region32: #{tpu_custom_call.1} parent=1 // pred_region
      %207 = vsyncadd [#allocation4], 0
      %s208 = sshll.u32 [#allocation7], 4
      %s209 = int_to_ptr.vmem [resolvable:$true] %s208
      %s210 = sshll.u32 %s3, 4
      %s211 = int_to_ptr.hbm [resolvable:$true] %s210
      %216 = dma.vmem_to_hbm [thread:$0]  %s209, 256, %s211, [#allocation4], 128, 128, 8
    $region33: #{tpu_custom_call.1} parent=1 // pred_fallthru
      _
    // Predicated region
    $region34: #{tpu_custom_call.1} parent=1 // pred_check
      _
    $region35: #{tpu_custom_call.1} parent=1 // pred_check_branch
      %218 = sbr.rel (0) target = $region37
    $region36: #{tpu_custom_call.1} parent=1 // pred_region
      %220 = dma.done [#allocation4], 256
    $region37: #{tpu_custom_call.1} parent=1 // pred_fallthru
      _
    %221 = vsyncpa [#allocation3], 1
    %222 = vsyncpa [#allocation6], 1
    %223 = vsyncpa [#allocation4], 1

</llo_original>
